<compile_context>
chip_gen: v7x
topology: tpu7x:2x2x1
jax: 0.10.0
libtpu: 0.0.40
codegen_flags: <defaults>
</compile_context>

<pallas_src>
import functools

import jax
import jax.numpy as jnp
from jax.experimental import pallas as pl
from jax.experimental.pallas import tpu as pltpu


def _round_up(v, m):
    return (v + m - 1) // m * m


def _round_down(v, m):
    return v // m * m


def _copt_graph_head_kernel(batch_ref, x_ref, w1_ref, b1_ref, w2_ref, b2_ref,
                            inv_ref, out_ref, sum_ref, *, n_nodes):
    """Fused: segment-mean pooling -> Linear+ReLU -> Linear, tiled over nodes.

    Grid axis 0 walks node tiles (reduction axis).  sum_ref [G_pad, D] is a VMEM
    accumulator resident across the grid; out_ref (constant block index) is
    written only on the last step.
    """
    k = pl.program_id(0)
    g_pad = sum_ref.shape[0]
    tile_n = x_ref.shape[0]

    @pl.when(k == 0)
    def _init():
        sum_ref[...] = jnp.zeros_like(sum_ref)

    # --- accumulate this node tile: per-graph feature sums ------------------
    # x / batch_idx are streamed UNPADDED; rows past n_nodes in the final tile
    # hold unspecified VMEM contents, so zero them before the matmul (a garbage
    # NaN times a 0 one-hot would still be NaN).
    start = k * tile_n
    rows_col = jax.lax.broadcasted_iota(jnp.int32, (tile_n, 1), 0) + start
    valid_col = rows_col < n_nodes                                # [TILE_N, 1]

    xv = jnp.where(valid_col, x_ref[...], 0).astype(jnp.bfloat16)  # zero tail rows, bf16 MXU path

    b_idx = batch_ref[...]                                        # [1, TILE_N] int32
    gid = jax.lax.broadcasted_iota(jnp.int32, (g_pad, tile_n), 0)
    onehot = (gid == b_idx).astype(jnp.bfloat16)                  # 0/1 exact in bf16

    sum_ref[...] += jnp.dot(onehot, xv,
                            preferred_element_type=jnp.float32)   # [G_pad, D], f32 accum

    # --- epilogue on last tile: exact mean, then the 2-layer MLP ------------
    @pl.when(k == pl.num_programs(0) - 1)
    def _finalize():
        pooled = sum_ref[...] * inv_ref[...]                      # mean pool (exact 1/count)
        h = jnp.dot(pooled, w1_ref[...],
                    preferred_element_type=jnp.float32) + b1_ref[...]
        h = jnp.maximum(h, 0.0)                                   # ReLU
        out = jnp.dot(h, w2_ref[...],
                      preferred_element_type=jnp.float32) + b2_ref[...]
        out_ref[...] = out.astype(out_ref.dtype)                  # last_act=None -> identity


def copt_graph_head(x, batch_idx, y, params, num_graphs, *,
                    target_tile_bytes=2 << 20, tile_n_override=None):
    """Returns (graph_features, y) like COPTGraphHead.forward.

    num_graphs is a static Python int (provided by the batcher) -> jit-friendly,
    no device->host sync.  x may be f32 or bf16; it is streamed in its native
    dtype (no wrapper-side pad/cast copy) and cast to bf16 per tile in VMEM.
    """
    w1, b1, w2, b2 = params
    n_nodes, dim_in = x.shape
    dim_out = w2.shape[1]
    x_itemsize = jnp.dtype(x.dtype).itemsize

    # Static padded sizes: lane-dense output (O -> 128), sublane-dense graphs (G -> 8).
    g_pad = _round_up(max(int(num_graphs), 1), 8)
    o_pad = _round_up(dim_out, 128)

    # Exact per-graph node counts: one cheap segment-sum over batch_idx (N int32),
    # negligible next to the N*D feature stream.  Exact reciprocal -> no approx
    # error in the mean.
    counts = jnp.zeros((num_graphs,), jnp.float32).at[batch_idx].add(1.0)
    inv = (1.0 / jnp.maximum(counts, 1.0)).reshape(num_graphs, 1)
    inv_p = jnp.pad(inv, ((0, g_pad - num_graphs), (0, 0)), constant_values=1.0)

    # Weights resident in VMEM (small): f32, dim_out padded to 128 lanes.
    w1_f = w1.astype(jnp.float32)
    b1_2d = b1.astype(jnp.float32).reshape(1, dim_in)
    w2_p = jnp.pad(w2.astype(jnp.float32), ((0, 0), (0, o_pad - dim_out)))
    b2_p = jnp.pad(b2.astype(jnp.float32).reshape(1, dim_out),
                   ((0, 0), (0, o_pad - dim_out)))

    # ---- generation-aware VMEM budget --------------------------------------
    try:
        info = pltpu.get_tpu_info()
        vmem_phys = int(getattr(info, "vmem_capacity_bytes", 64 << 20))
    except Exception:
        vmem_phys = 64 << 20                     # v7x-safe fallback
    vmem_cap = (vmem_phys * 3) // 4              # 96 MiB v5e/v6e, 48 MiB v7x

    # ---- auto-size the node tile so the streamed x tile is MiB-scale -------
    # Residents (constant-index inputs are still double-buffered by the pipeline)
    # + sum scratch + output block, in bytes.
    resident = 4 * (2 * dim_in * dim_in + 2 * dim_in        # W1, b1
                    + 2 * dim_in * o_pad + 2 * o_pad        # W2, b2 (padded)
                    + 2 * g_pad                             # inv counts
                    + 2 * g_pad * o_pad                     # out block
                    + 2 * g_pad * dim_in)                   # sum scratch + MLP temps
    per_node = (2 * dim_in * x_itemsize        # x tile, double-buffered
                + 2 * 4 * 8                    # (1, T) int32 batch tile, sublane-padded, 2 bufs
                + 8 * g_pad)                   # one-hot(bf16)/iota(i32)/mask intermediates
    budget = max(vmem_cap * 6 // 10 - resident - (1 << 20), per_node * 128)
    max_by_vmem = budget // per_node
    tile_target = max(target_tile_bytes // max(dim_in * x_itemsize, 1), 1)
    tile_n = max(min(tile_target, max_by_vmem), 128)
    if tile_n_override is not None:
        tile_n = int(tile_n_override)

    if tile_n >= n_nodes:
        tile_n, n_tiles = n_nodes, 1             # single full block: no alignment constraints
    else:
        tile_n = max(_round_down(tile_n, 128), 128)   # 128 | tile_n satisfies both (8,128) rules
        n_tiles = (n_nodes + tile_n - 1) // tile_n    # ragged final tile handled in-kernel

    vmem_limit = int(min(max(2 * (resident + per_node * tile_n), 4 << 20), vmem_cap))

    kernel = functools.partial(_copt_graph_head_kernel, n_nodes=n_nodes)

    out = pl.pallas_call(
        kernel,
        out_shape=jax.ShapeDtypeStruct((g_pad, o_pad), jnp.float32),
        grid_spec=pltpu.PrefetchScalarGridSpec(
            num_scalar_prefetch=0,
            grid=(n_tiles,),
            in_specs=[
                pl.BlockSpec((1, tile_n), lambda k: (0, k)),        # batch ids (streamed, unpadded)
                pl.BlockSpec((tile_n, dim_in), lambda k: (k, 0)),   # node features (streamed, unpadded)
                pl.BlockSpec((dim_in, dim_in), lambda k: (0, 0)),   # W1 (resident)
                pl.BlockSpec((1, dim_in), lambda k: (0, 0)),        # b1 (resident)
                pl.BlockSpec((dim_in, o_pad), lambda k: (0, 0)),    # W2 padded (resident)
                pl.BlockSpec((1, o_pad), lambda k: (0, 0)),         # b2 padded (resident)
                pl.BlockSpec((g_pad, 1), lambda k: (0, 0)),         # exact 1/count (resident)
            ],
            out_specs=pl.BlockSpec((g_pad, o_pad), lambda k: (0, 0)),  # accumulator-style output
            scratch_shapes=[
                pltpu.VMEM((g_pad, dim_in), jnp.float32),  # pooled-sum accumulator
            ],
        ),
        compiler_params=pltpu.CompilerParams(
            dimension_semantics=("arbitrary",),   # node axis is a reduction
            vmem_limit_bytes=vmem_limit,
        ),
    )(batch_idx.astype(jnp.int32).reshape(1, n_nodes),
      x, w1_f, b1_2d, w2_p, b2_p, inv_p)

    # Strip lane/sublane padding outside the kernel; pass labels through.
    return out[:num_graphs, :dim_out], y


def _reference(x, batch_idx, y, params, num_graphs):
    """Pure-JAX f32 reference of COPTGraphHead.forward."""
    w1, b1, w2, b2 = params
    x = x.astype(jnp.float32)
    onehot = (jnp.arange(num_graphs)[:, None] == batch_idx[None, :]).astype(jnp.float32)
    counts = jnp.maximum(onehot.sum(axis=1, keepdims=True), 1.0)
    pooled = onehot @ x / counts
    h = jnp.maximum(pooled @ w1 + b1, 0.0)
    return h @ w2 + b2, y


def _init_params(key, dim_in, dim_out):
    """Deterministic init mimicking nn.Linear default (uniform +/- 1/sqrt(fan_in))."""
    k1, k2, k3, k4 = jax.random.split(key, 4)
    bound1 = 1.0 / jnp.sqrt(dim_in)
    w1 = jax.random.uniform(k1, (dim_in, dim_in), jnp.float32, -bound1, bound1)
    b1 = jax.random.uniform(k2, (dim_in,), jnp.float32, -bound1, bound1)
    w2 = jax.random.uniform(k3, (dim_in, dim_out), jnp.float32, -bound1, bound1)
    b2 = jax.random.uniform(k4, (dim_out,), jnp.float32, -bound1, bound1)
    return w1, b1, w2, b2


if __name__ == "__main__":
    key = jax.random.PRNGKey(0)
    k_x, k_y, k_p, k_x2, k_b2 = jax.random.split(key, 5)

    # --- test 1: small batch, single full-block tile -------------------------
    N_NODES = 8        # total nodes across the batch of graphs
    DIM_IN = 32        # node feature dim
    DIM_OUT = 4        # prediction dim
    N_GRAPHS = 2       # static graph count from the batcher (no host sync)

    x = jax.random.normal(k_x, (N_NODES, DIM_IN), jnp.float32)
    # nodes 0..2 belong to graph 0, nodes 3..7 to graph 1
    batch_idx = jnp.array([0, 0, 0, 1, 1, 1, 1, 1], dtype=jnp.int32)
    y = jax.random.normal(k_y, (N_GRAPHS, DIM_OUT), jnp.float32)  # graph labels
    params = _init_params(k_p, DIM_IN, DIM_OUT)

    out_x, out_y = copt_graph_head(x, batch_idx, y, params, N_GRAPHS)
    jax.block_until_ready(out_x)
    jax.block_until_ready(out_y)

    ref_x, ref_y = _reference(x, batch_idx, y, params, N_GRAPHS)
    assert out_x.shape == (N_GRAPHS, DIM_OUT)
    # Pooling matmul runs with bf16 MXU inputs (f32 accumulation) -> bf16 tolerance.
    assert jnp.allclose(out_x, ref_x, atol=2e-2, rtol=2e-2)
    assert jnp.array_equal(out_y, ref_y)

    # --- test 2: multi-tile reduction grid with a ragged final tile ----------
    N2, G2 = 300, 3
    x2 = jax.random.normal(k_x2, (N2, DIM_IN), jnp.float32)
    batch_idx2 = jnp.sort(jax.random.randint(k_b2, (N2,), 0, G2).astype(jnp.int32))
    y2 = jnp.zeros((G2, DIM_OUT), jnp.float32)
    out2, _ = copt_graph_head(x2, batch_idx2, y2, params, G2, tile_n_override=128)
    jax.block_until_ready(out2)
    ref2, _ = _reference(x2, batch_idx2, y2, params, G2)
    assert jnp.allclose(out2, ref2, atol=2e-2, rtol=2e-2)

    # --- test 3: bf16-streamed activations (halves the HBM node stream) ------
    out_bf, _ = copt_graph_head(x.astype(jnp.bfloat16), batch_idx, y, params, N_GRAPHS)
    jax.block_until_ready(out_bf)
    assert jnp.allclose(out_bf, ref_x, atol=3e-2, rtol=3e-2)

    print("KERNEL_OK")
</pallas_src>

<mosaic_0001>
module attributes {stable_mosaic.version = 11 : i64} {
  func.func @_copt_graph_head_kernel(%arg0: i32, %arg1: memref<1x8xi32, #tpu.memory_space<vmem>>, %arg2: memref<8x32xf32, #tpu.memory_space<vmem>>, %arg3: memref<32x32xf32, #tpu.memory_space<vmem>>, %arg4: memref<1x32xf32, #tpu.memory_space<vmem>>, %arg5: memref<32x128xf32, #tpu.memory_space<vmem>>, %arg6: memref<1x128xf32, #tpu.memory_space<vmem>>, %arg7: memref<8x1xf32, #tpu.memory_space<vmem>>, %arg8: memref<8x128xf32, #tpu.memory_space<vmem>>, %arg9: memref<8x32xf32, #tpu.memory_space<vmem>>) attributes {dimension_semantics = [#tpu.dimension_semantics<arbitrary>], iteration_bounds = array<i64: 1>, scalar_prefetch = 0 : i64, scratch_operands = 1 : i64, tpu.core_type = #tpu.core_type<tc>, window_params = [{transform_indices = @transform_0, window_bounds = array<i64: 1, 8>}, {transform_indices = @transform_1, window_bounds = array<i64: 8, 32>}, {pipeline_mode = #tpu.pipeline_mode<synchronous>, transform_indices = @transform_2, window_bounds = array<i64: 32, 32>}, {pipeline_mode = #tpu.pipeline_mode<synchronous>, transform_indices = @transform_3, window_bounds = array<i64: 1, 32>}, {pipeline_mode = #tpu.pipeline_mode<synchronous>, transform_indices = @transform_4, window_bounds = array<i64: 32, 128>}, {pipeline_mode = #tpu.pipeline_mode<synchronous>, transform_indices = @transform_5, window_bounds = array<i64: 1, 128>}, {pipeline_mode = #tpu.pipeline_mode<synchronous>, transform_indices = @transform_6, window_bounds = array<i64: 8, 1>}, {pipeline_mode = #tpu.pipeline_mode<synchronous>, transform_indices = @transform_7, window_bounds = array<i64: 8, 128>}]} {
    %c0_i32 = arith.constant 0 : i32
    %0 = arith.cmpi eq, %arg0, %c0_i32 : i32
    %1 = arith.extui %0 : i1 to i32
    %c0_i32_0 = arith.constant 0 : i32
    %2 = arith.cmpi ne, %1, %c0_i32_0 : i32
    scf.if %2 {
      %cst_12 = arith.constant 0.000000e+00 : f32
      %30 = vector.broadcast %cst_12 : f32 to vector<8x32xf32>
      %c0_13 = arith.constant 0 : index
      %c0_14 = arith.constant 0 : index
      %31 = vector.load %arg9[%c0_13, %c0_14] : memref<8x32xf32, #tpu.memory_space<vmem>>, vector<8x32xf32>
      tpu.vector_store %arg9[%c0_13, %c0_14], %30 {strides = array<i32>} : memref<8x32xf32, #tpu.memory_space<vmem>>, vector<8x32xf32>,
    } else {
    }
    %c8_i32 = arith.constant 8 : i32
    %3 = arith.muli %arg0, %c8_i32 : i32
    %4 = tpu.iota {dimensions = array<i32: 0>} : vector<8x1xi32>
    %5 = vector.broadcast %3 : i32 to vector<8x1xi32>
    %6 = arith.addi %4, %5 : vector<8x1xi32>
    %c8_i32_1 = arith.constant 8 : i32
    %7 = vector.broadcast %c8_i32_1 : i32 to vector<8x1xi32>
    %8 = arith.cmpi slt, %6, %7 : vector<8x1xi32>
    %c0 = arith.constant 0 : index
    %c0_2 = arith.constant 0 : index
    %9 = vector.load %arg2[%c0, %c0_2] : memref<8x32xf32, #tpu.memory_space<vmem>>, vector<8x32xf32>
    %c0_i32_3 = arith.constant 0 : i32
    %10 = arith.sitofp %c0_i32_3 : i32 to f32
    %11 = vector.shape_cast %8 : vector<8x1xi1> to vector<8x1xi1>
    %12 = vector.broadcast %11 : vector<8x1xi1> to vector<8x32xi1>
    %13 = vector.broadcast %10 : f32 to vector<8x32xf32>
    %14 = arith.select %12, %9, %13 : vector<8x32xi1>, vector<8x32xf32>
    %15 = arith.truncf %14 : vector<8x32xf32> to vector<8x32xbf16>
    %c0_4 = arith.constant 0 : index
    %c0_5 = arith.constant 0 : index
    %16 = vector.load %arg1[%c0_4, %c0_5] : memref<1x8xi32, #tpu.memory_space<vmem>>, vector<1x8xi32>
    %17 = tpu.iota {dimensions = array<i32: 0>} : vector<8x8xi32>
    %18 = vector.broadcast %16 : vector<1x8xi32> to vector<8x8xi32>
    %19 = arith.cmpi eq, %17, %18 : vector<8x8xi32>
    %20 = arith.extui %19 : vector<8x8xi1> to vector<8x8xi32>
    %21 = arith.sitofp %20 : vector<8x8xi32> to vector<8x8xf32>
    %22 = arith.truncf %21 : vector<8x8xf32> to vector<8x8xbf16>
    %c0_6 = arith.constant 0 : index
    %c0_7 = arith.constant 0 : index
    %23 = vector.load %arg9[%c0_6, %c0_7] : memref<8x32xf32, #tpu.memory_space<vmem>>, vector<8x32xf32>
    %cst = arith.constant dense<0.000000e+00> : vector<8x32xf32>
    %24 = tpu.matmul %22, %15, %cst {dimension_numbers = #tpu.dot_dimension_numbers<[1], [0], [0], [1], [0, 0, 1, 1], [], []>} : vector<8x8xbf16>, vector<8x32xbf16>, vector<8x32xf32> -> vector<8x32xf32>
    %25 = arith.addf %23, %24 : vector<8x32xf32>
    %c0_8 = arith.constant 0 : index
    %c0_9 = arith.constant 0 : index
    %26 = vector.load %arg9[%c0_8, %c0_9] : memref<8x32xf32, #tpu.memory_space<vmem>>, vector<8x32xf32>
    tpu.vector_store %arg9[%c0_8, %c0_9], %25 {strides = array<i32>} : memref<8x32xf32, #tpu.memory_space<vmem>>, vector<8x32xf32>,
    %c0_i32_10 = arith.constant 0 : i32
    %27 = arith.cmpi eq, %arg0, %c0_i32_10 : i32
    %28 = arith.extui %27 : i1 to i32
    %c0_i32_11 = arith.constant 0 : i32
    %29 = arith.cmpi ne, %28, %c0_i32_11 : i32
    scf.if %29 {
      %c0_12 = arith.constant 0 : index
      %c0_13 = arith.constant 0 : index
      %30 = vector.load %arg9[%c0_12, %c0_13] : memref<8x32xf32, #tpu.memory_space<vmem>>, vector<8x32xf32>
      %c0_14 = arith.constant 0 : index
      %c0_15 = arith.constant 0 : index
      %31 = vector.load %arg7[%c0_14, %c0_15] : memref<8x1xf32, #tpu.memory_space<vmem>>, vector<8x1xf32>
      %32 = vector.broadcast %31 : vector<8x1xf32> to vector<8x32xf32>
      %33 = arith.mulf %30, %32 : vector<8x32xf32>
      %c0_16 = arith.constant 0 : index
      %c0_17 = arith.constant 0 : index
      %34 = vector.load %arg3[%c0_16, %c0_17] : memref<32x32xf32, #tpu.memory_space<vmem>>, vector<32x32xf32>
      %cst_18 = arith.constant dense<0.000000e+00> : vector<8x32xf32>
      %35 = tpu.matmul %33, %34, %cst_18 {dimension_numbers = #tpu.dot_dimension_numbers<[1], [0], [0], [1], [0, 0, 1, 1], [], []>} : vector<8x32xf32>, vector<32x32xf32>, vector<8x32xf32> -> vector<8x32xf32>
      %c0_19 = arith.constant 0 : index
      %c0_20 = arith.constant 0 : index
      %36 = vector.load %arg4[%c0_19, %c0_20] : memref<1x32xf32, #tpu.memory_space<vmem>>, vector<1x32xf32>
      %37 = vector.broadcast %36 : vector<1x32xf32> to vector<8x32xf32>
      %38 = arith.addf %35, %37 : vector<8x32xf32>
      %cst_21 = arith.constant 0.000000e+00 : f32
      %39 = vector.broadcast %cst_21 : f32 to vector<8x32xf32>
      %40 = arith.maximumf %38, %39 : vector<8x32xf32>
      %c0_22 = arith.constant 0 : index
      %c0_23 = arith.constant 0 : index
      %41 = vector.load %arg5[%c0_22, %c0_23] : memref<32x128xf32, #tpu.memory_space<vmem>>, vector<32x128xf32>
      %cst_24 = arith.constant dense<0.000000e+00> : vector<8x128xf32>
      %42 = tpu.matmul %40, %41, %cst_24 {dimension_numbers = #tpu.dot_dimension_numbers<[1], [0], [0], [1], [0, 0, 1, 1], [], []>} : vector<8x32xf32>, vector<32x128xf32>, vector<8x128xf32> -> vector<8x128xf32>
      %c0_25 = arith.constant 0 : index
      %c0_26 = arith.constant 0 : index
      %43 = vector.load %arg6[%c0_25, %c0_26] : memref<1x128xf32, #tpu.memory_space<vmem>>, vector<1x128xf32>
      %44 = vector.broadcast %43 : vector<1x128xf32> to vector<8x128xf32>
      %45 = arith.addf %42, %44 : vector<8x128xf32>
      %c0_27 = arith.constant 0 : index
      %c0_28 = arith.constant 0 : index
      %46 = vector.load %arg8[%c0_27, %c0_28] : memref<8x128xf32, #tpu.memory_space<vmem>>, vector<8x128xf32>
      tpu.vector_store %arg8[%c0_27, %c0_28], %45 {strides = array<i32>} : memref<8x128xf32, #tpu.memory_space<vmem>>, vector<8x128xf32>,
    } else {
    }
    return
  }
  func.func @transform_0(%arg0: i32) -> (i32, i32) {
    %c0_i32 = arith.constant 0 : i32
    %c0_i32_0 = arith.constant 0 : i32
    return %c0_i32, %arg0 : i32, i32
  }
  func.func @transform_1(%arg0: i32) -> (i32, i32) {
    %c0_i32 = arith.constant 0 : i32
    %c0_i32_0 = arith.constant 0 : i32
    return %arg0, %c0_i32 : i32, i32
  }
  func.func @transform_2(%arg0: i32) -> (i32, i32) {
    %c0_i32 = arith.constant 0 : i32
    %c0_i32_0 = arith.constant 0 : i32
    %c0_i32_1 = arith.constant 0 : i32
    return %c0_i32, %c0_i32_0 : i32, i32
  }
  func.func @transform_3(%arg0: i32) -> (i32, i32) {
    %c0_i32 = arith.constant 0 : i32
    %c0_i32_0 = arith.constant 0 : i32
    %c0_i32_1 = arith.constant 0 : i32
    return %c0_i32, %c0_i32_0 : i32, i32
  }
  func.func @transform_4(%arg0: i32) -> (i32, i32) {
    %c0_i32 = arith.constant 0 : i32
    %c0_i32_0 = arith.constant 0 : i32
    %c0_i32_1 = arith.constant 0 : i32
    return %c0_i32, %c0_i32_0 : i32, i32
  }
  func.func @transform_5(%arg0: i32) -> (i32, i32) {
    %c0_i32 = arith.constant 0 : i32
    %c0_i32_0 = arith.constant 0 : i32
    %c0_i32_1 = arith.constant 0 : i32
    return %c0_i32, %c0_i32_0 : i32, i32
  }
  func.func @transform_6(%arg0: i32) -> (i32, i32) {
    %c0_i32 = arith.constant 0 : i32
    %c0_i32_0 = arith.constant 0 : i32
    %c0_i32_1 = arith.constant 0 : i32
    return %c0_i32, %c0_i32_0 : i32, i32
  }
  func.func @transform_7(%arg0: i32) -> (i32, i32) {
    %c0_i32 = arith.constant 0 : i32
    %c0_i32_0 = arith.constant 0 : i32
    %c0_i32_1 = arith.constant 0 : i32
    return %c0_i32, %c0_i32_0 : i32, i32
  }
}

</mosaic_0001>

<llo_original>
// kernel: tpu_custom_call.1
$region0: #{tpu_custom_call.1}
  #allocation0 [shape = 'u32[]', space=smem, size = 0x4, offset = 0x4, fixed_abs, tag = 'smem constant byte address 0x4 - core index']
  #allocation1 [shape = 'u32[144,128]{1,0:T(1,128)}', space=vmem, size = 0x12000, scoped, tag = 'internal scratch']
  #allocation2 [shape = 'f32[8,32]{1,0:T(8,128)}', space=vmem, size = 0x1000, scoped, tag = 'scratch operand']
  %s0 = inlined_call_operand.vmem [shape: s32[1,8], index: 0, kind: input, shape index: {}]
  %s1 = inlined_call_operand.vmem [shape: f32[8,32], index: 1, kind: input, shape index: {}]
  %s2 = inlined_call_operand.hbm [shape: f32[32,32], index: 2, kind: input, shape index: {}]
  %s3 = inlined_call_operand.vmem [shape: f32[1,32], index: 3, kind: input, shape index: {}]
  %s4 = inlined_call_operand.hbm [shape: f32[32,128], index: 4, kind: input, shape index: {}]
  %s5 = inlined_call_operand.vmem [shape: f32[1,128], index: 5, kind: input, shape index: {}]
  %s6 = inlined_call_operand.vmem [shape: f32[8,1], index: 6, kind: input, shape index: {}]
  %s7 = inlined_call_operand.hbm [shape: f32[8,128], index: 7, kind: output, shape index: {}]
  %s8 = sld [smem:[#allocation0]]
  $region54: #{tpu_custom_call.1} parent=0
    _
  %s10 = ssub.s32 1, %s8
  %s11 = scalar_select 0, %s10, %s8
  $region1: #{tpu_custom_call.1} parent=0
    #allocation3 [shape = 'u8[16384]{0}', space=vmem, size = 0x4000, scoped, tag = 'input window, operand 2, single buffered']
    #allocation4 [shape = 's32[1]{0}', space=sflag, size = 0x4, scoped, tag = 'scoped memory for tpu_custom_call.1']
    #allocation5 [shape = 's32[1]{0}', space=sflag, size = 0x4, scoped, tag = 'scoped memory for tpu_custom_call.1']
    #allocation6 [shape = 'u8[16384]{0}', space=vmem, size = 0x4000, scoped, tag = 'input window, operand 4, single buffered']
    #allocation7 [shape = 's32[1]{0}', space=sflag, size = 0x4, scoped, tag = 'scoped memory for tpu_custom_call.1']
    #allocation8 [shape = 'u8[4096]{0}', space=vmem, size = 0x1000, scoped, tag = 'output window, operand 0, single buffered']
    %12 = vsyncpa [#allocation4], 0
    %13 = vsyncpa [#allocation7], 0
    %14 = vsyncpa [#allocation5], 0
    // Predicated region
    $region2: #{tpu_custom_call.1} parent=1 // pred_check
      _
    $region3: #{tpu_custom_call.1} parent=1 // pred_check_branch
      %16 = sbr.rel (0) target = $region5
    $region4: #{tpu_custom_call.1} parent=1 // pred_region
      _
    $region5: #{tpu_custom_call.1} parent=1 // pred_fallthru
      _
    // Predicated region
    $region6: #{tpu_custom_call.1} parent=1 // pred_check
      _
    $region7: #{tpu_custom_call.1} parent=1 // pred_check_branch
      %18 = sbr.rel (0) target = $region9
    $region8: #{tpu_custom_call.1} parent=1 // pred_region
      _
    $region9: #{tpu_custom_call.1} parent=1 // pred_fallthru
      _
    // Predicated region
    $region10: #{tpu_custom_call.1} parent=1 // pred_check
      _
    $region11: #{tpu_custom_call.1} parent=1 // pred_check_branch
      %20 = sbr.rel (0) target = $region13
    $region12: #{tpu_custom_call.1} parent=1 // pred_region
      %s22 = ssub.s32 512, 512
      %23 = vsyncadd [#allocation4], %s22
      %s24 = sshll.u32 [#allocation3], 4
      %s25 = int_to_ptr.vmem [resolvable:$true] %s24
      %30 = dma.hbm_to_vmem [thread:$0]  %s2, 512, %s25, [#allocation4], 128, 128, 8
    $region13: #{tpu_custom_call.1} parent=1 // pred_fallthru
      _
    // Predicated region
    $region14: #{tpu_custom_call.1} parent=1 // pred_check
      _
    $region15: #{tpu_custom_call.1} parent=1 // pred_check_branch
      %32 = sbr.rel (0) target = $region17
    $region16: #{tpu_custom_call.1} parent=1 // pred_region
      _
    $region17: #{tpu_custom_call.1} parent=1 // pred_fallthru
      _
    // Predicated region
    $region18: #{tpu_custom_call.1} parent=1 // pred_check
      _
    $region19: #{tpu_custom_call.1} parent=1 // pred_check_branch
      %34 = sbr.rel (0) target = $region21
    $region20: #{tpu_custom_call.1} parent=1 // pred_region
      %s36 = ssub.s32 512, 512
      %37 = vsyncadd [#allocation7], %s36
      %s38 = sshll.u32 [#allocation6], 4
      %s39 = int_to_ptr.vmem [resolvable:$true] %s38
      %44 = dma.hbm_to_vmem [thread:$0]  %s4, 512, %s39, [#allocation7], 128, 128, 8
    $region21: #{tpu_custom_call.1} parent=1 // pred_fallthru
      _
    // Predicated region
    $region22: #{tpu_custom_call.1} parent=1 // pred_check
      _
    $region23: #{tpu_custom_call.1} parent=1 // pred_check_branch
      %46 = sbr.rel (0) target = $region25
    $region24: #{tpu_custom_call.1} parent=1 // pred_region
      _
    $region25: #{tpu_custom_call.1} parent=1 // pred_fallthru
      _
    // Predicated region
    $region26: #{tpu_custom_call.1} parent=1 // pred_check
      _
    $region27: #{tpu_custom_call.1} parent=1 // pred_check_branch
      %48 = sbr.rel (0) target = $region29
    $region28: #{tpu_custom_call.1} parent=1 // pred_region
      _
    $region29: #{tpu_custom_call.1} parent=1 // pred_fallthru
      _
    // Predicated region
    $region30: #{tpu_custom_call.1} parent=1 // pred_check
      _
    $region31: #{tpu_custom_call.1} parent=1 // pred_check_branch
      %50 = sbr.rel (0) target = $region33
    $region32: #{tpu_custom_call.1} parent=1 // pred_region
      %51 = dma.done [#allocation4], 512
    $region33: #{tpu_custom_call.1} parent=1 // pred_fallthru
      _
    // Predicated region
    $region34: #{tpu_custom_call.1} parent=1 // pred_check
      _
    $region35: #{tpu_custom_call.1} parent=1 // pred_check_branch
      %53 = sbr.rel (0) target = $region37
    $region36: #{tpu_custom_call.1} parent=1 // pred_region
      %54 = dma.done [#allocation7], 512
    $region37: #{tpu_custom_call.1} parent=1 // pred_fallthru
      _
    %p56 = scmp.eq.s32.totalorder 0, 0
    // Predicated region
    $region38: #{tpu_custom_call.1} parent=1 // pred_check
      %p57 = pneg %p56
    $region39: #{tpu_custom_call.1} parent=1 // pred_check_branch
      %59 = sbr.rel (%p57) target = $region41
    $region40: #{tpu_custom_call.1} parent=1 // pred_region
      %vm60 = vcmask 261120
      %61 = vst.msk [vmem:[#allocation2] sm:$0xff] %vm60, 0.0
    $region41: #{tpu_custom_call.1} parent=1 // pred_fallthru
      _
    %s62 = smul.u32 0, 8
    %v63 = vlaneseq
    %v64 = vshrl.u32 %v63, 7
    %v65 = vstv %s62
    %v66 = vadd.s32 %v64, %v65
    %vm67 = vcmp.lt.s32.totalorder %v66, 8
    %v68 = vld [vmem:[%s1] sm:$0xff]
    %v69 = vsel %vm67, 1, 0
    %vm70 = vcmp.eq.s32.totalorder %v69, 1
    %v71 = vsel %vm70, %v68, 0.0
    %v72 = vpack.c.bf16 %v71, %v71
    %v73 = vld [vmem:[%s0] sm:$0x1]
    %v74 = vlaneseq
    %v75 = vshrl.u32 %v74, 7
    %v76 = vsub.s32 0, %v75
    %v77 = vrot.slane %v73, %v76
    %vm78 = vcmp.eq.s32.totalorder %v64, %v77
    %v79 = vsel %vm78, 1, 0
    %v80 = vcvt.s32.f32 %v79
    %v81 = vpack.c.bf16 %v80, %v80
    %v82 = vld [vmem:[#allocation2] sm:$0xff]
    %vm83 = vcmask 64512
    %v85 = vsel %vm83, %v81, 0
    %vm87 = vcmask 1043456
    %v89 = vsel %vm87, %v72, 0
    %91 = vmatprep.subr.bf16.mxu0 0
    %92 = vmatpush1.bf16.msra.mxu0 %v89
    %93 = vmatprep.subr.bf16.mxu0 0
    %94 = vmatpush1.bf16.msra.mxu0 0
    %95 = vmatprep.subr.bf16.mxu0 0
    %96 = vmatpush1.bf16.msra.mxu0 0
    %97 = vmatprep.subr.bf16.mxu0 0
    %98 = vmatpush1.bf16.msra.mxu0 0
    %99 = vmatprep.subr.bf16.mxu0 0
    %100 = vmatpush1.bf16.msra.mxu0 0
    %101 = vmatprep.subr.bf16.mxu0 0
    %102 = vmatpush1.bf16.msra.mxu0 0
    %103 = vmatprep.subr.bf16.mxu0 0
    %104 = vmatpush1.bf16.msra.mxu0 0
    %105 = vmatprep.subr.bf16.mxu0 0
    %106 = vmatpush1.bf16.msra.mxu0 0
    %107 = vmatprep.subr.bf16.mxu0 0
    %108 = vmatpush1.bf16.msra.mxu0 0
    %109 = vmatprep.subr.bf16.mxu0 0
    %110 = vmatpush1.bf16.msra.mxu0 0
    %111 = vmatprep.subr.bf16.mxu0 0
    %112 = vmatpush1.bf16.msra.mxu0 0
    %113 = vmatprep.subr.bf16.mxu0 0
    %114 = vmatpush1.bf16.msra.mxu0 0
    %115 = vmatprep.subr.bf16.mxu0 0
    %116 = vmatpush1.bf16.msra.mxu0 0
    %117 = vmatprep.subr.bf16.mxu0 0
    %118 = vmatpush1.bf16.msra.mxu0 0
    %119 = vmatprep.subr.bf16.mxu0 0
    %120 = vmatpush1.bf16.msra.mxu0 0
    %121 = vmatprep.subr.bf16.mxu0 0
    %122 = vmatpush1.bf16.msra.mxu0 0
    %123 = vmatprep.mubr.bf16.mxu0 0
    %124 = vmatmul.mubr.bf16.gmra.mrb[0].mxu0 %v85
    %v125 = vpop.f32.mrb[0].mxu0
    %v126 = vadd.f32 0.0, %v125
    %v127 = vpop.f32.mrb[0].mxu0
    %v128 = vpop.f32.mrb[0].mxu0
    %v129 = vpop.f32.mrb[0].mxu0
    %130 = vdwg.mxu0
    %v131 = vadd.f32 %v82, %v126
    %vm132 = vcmask 261120
    %133 = vst.msk [vmem:[#allocation2] sm:$0xff] %vm132, %v131
    // Predicated region
    $region42: #{tpu_custom_call.1} parent=1 // pred_check
      %p134 = pneg %p56
    $region43: #{tpu_custom_call.1} parent=1 // pred_check_branch
      %136 = sbr.rel (%p134) target = $region45
    $region44: #{tpu_custom_call.1} parent=1 // pred_region
      %v137 = vld [vmem:[#allocation2] sm:$0xff]
      %v138 = vld [vmem:[%s6] sm:$0xff]
      %140 = vset.pattern.permute.xlu0 0
      %141 = vperm.xlu0 %140, %v138
      %v142 = vpop.permute.xlu0 %141
      %v144 = vmul.f32 %v137, %v142
      %v145 = vld [vmem:[#allocation3] sm:$0xff]
      %v146 = vld [vmem:[#allocation3 + $0x8] sm:$0xff]
      %v147 = vld [vmem:[#allocation3 + $0x10] sm:$0xff]
      %v148 = vld [vmem:[#allocation3 + $0x18] sm:$0xff]
      %v149 = vld [vmem:[%s3] sm:$0x1]
      %v151 = vlaneseq
      %v152 = vshrl.u32 %v151, 7
      %v153 = vsub.s32 0, %v152
      %v154 = vrot.slane %v149, %v153
      %v157 = vsel %vm132, %v144, 0
      %159 = vmatprep.subr.mxu0 0.0
      %160 = vmatpush1.msra.mxu0 %v145
      %161 = vmatprep.subr.mxu0 0.0
      %162 = vmatpush1.msra.mxu0 %v146
      %163 = vmatprep.subr.mxu0 0.0
      %164 = vmatpush1.msra.mxu0 %v147
      %165 = vmatprep.subr.mxu0 0.0
      %166 = vmatpush1.msra.mxu0 %v148
      %167 = vmatprep.subr.mxu0 0.0
      %168 = vmatpush1.msra.mxu0 0.0
      %169 = vmatprep.subr.mxu0 0.0
      %170 = vmatpush1.msra.mxu0 0.0
      %171 = vmatprep.subr.mxu0 0.0
      %172 = vmatpush1.msra.mxu0 0.0
      %173 = vmatprep.subr.mxu0 0.0
      %174 = vmatpush1.msra.mxu0 0.0
      %175 = vmatprep.subr.mxu0 0.0
      %176 = vmatpush1.msra.mxu0 0.0
      %177 = vmatprep.subr.mxu0 0.0
      %178 = vmatpush1.msra.mxu0 0.0
      %179 = vmatprep.subr.mxu0 0.0
      %180 = vmatpush1.msra.mxu0 0.0
      %181 = vmatprep.subr.mxu0 0.0
      %182 = vmatpush1.msra.mxu0 0.0
      %183 = vmatprep.subr.mxu0 0.0
      %184 = vmatpush1.msra.mxu0 0.0
      %185 = vmatprep.subr.mxu0 0.0
      %186 = vmatpush1.msra.mxu0 0.0
      %187 = vmatprep.subr.mxu0 0.0
      %188 = vmatpush1.msra.mxu0 0.0
      %189 = vmatprep.subr.mxu0 0.0
      %190 = vmatpush1.msra.mxu0 0.0
      %191 = vmatprep.subr.mxu0 0.0
      %192 = vmatpush1.msra.mxu0 0.0
      %193 = vmatprep.subr.mxu0 0.0
      %194 = vmatpush1.msra.mxu0 0.0
      %195 = vmatprep.subr.mxu0 0.0
      %196 = vmatpush1.msra.mxu0 0.0
      %197 = vmatprep.subr.mxu0 0.0
      %198 = vmatpush1.msra.mxu0 0.0
      %199 = vmatprep.subr.mxu0 0.0
      %200 = vmatpush1.msra.mxu0 0.0
      %201 = vmatprep.subr.mxu0 0.0
      %202 = vmatpush1.msra.mxu0 0.0
      %203 = vmatprep.subr.mxu0 0.0
      %204 = vmatpush1.msra.mxu0 0.0
      %205 = vmatprep.subr.mxu0 0.0
      %206 = vmatpush1.msra.mxu0 0.0
      %207 = vmatprep.subr.mxu0 0.0
      %208 = vmatpush1.msra.mxu0 0.0
      %209 = vmatprep.subr.mxu0 0.0
      %210 = vmatpush1.msra.mxu0 0.0
      %211 = vmatprep.subr.mxu0 0.0
      %212 = vmatpush1.msra.mxu0 0.0
      %213 = vmatprep.subr.mxu0 0.0
      %214 = vmatpush1.msra.mxu0 0.0
      %215 = vmatprep.subr.mxu0 0.0
      %216 = vmatpush1.msra.mxu0 0.0
      %217 = vmatprep.subr.mxu0 0.0
      %218 = vmatpush1.msra.mxu0 0.0
      %219 = vmatprep.subr.mxu0 0.0
      %220 = vmatpush1.msra.mxu0 0.0
      %221 = vmatprep.subr.mxu0 0.0
      %222 = vmatpush1.msra.mxu0 0.0
      %223 = vmatprep.mubr.f32.mxu0 0.0
      %224 = vmatmul.mubr.f32.gmra.mrb[0].mxu0 %v157
      %v225 = vpop.f32.mrb[0].mxu0
      %v226 = vadd.f32 %v154, %v225
      %v227 = vpop.f32.mrb[0].mxu0
      %228 = vdwg.mxu0
      %v229 = vmax.f32 %v226, 0.0
      %v230 = vld [vmem:[#allocation6] sm:$0xff]
      %v231 = vld [vmem:[#allocation6 + $0x8] sm:$0xff]
      %v232 = vld [vmem:[#allocation6 + $0x10] sm:$0xff]
      %v233 = vld [vmem:[#allocation6 + $0x18] sm:$0xff]
      %v234 = vld [vmem:[%s5] sm:$0x1]
      %v236 = vlaneseq
      %v237 = vshrl.u32 %v236, 7
      %v238 = vsub.s32 0, %v237
      %v239 = vrot.slane %v234, %v238
      %v242 = vsel %vm132, %v229, 0
      %244 = vmatprep.subr.mxu0 0.0
      %245 = vmatpush1.msra.mxu0 %v230
      %246 = vmatprep.subr.mxu0 0.0
      %247 = vmatpush1.msra.mxu0 %v231
      %248 = vmatprep.subr.mxu0 0.0
      %249 = vmatpush1.msra.mxu0 %v232
      %250 = vmatprep.subr.mxu0 0.0
      %251 = vmatpush1.msra.mxu0 %v233
      %252 = vmatprep.subr.mxu0 0.0
      %253 = vmatpush1.msra.mxu0 0.0
      %254 = vmatprep.subr.mxu0 0.0
      %255 = vmatpush1.msra.mxu0 0.0
      %256 = vmatprep.subr.mxu0 0.0
      %257 = vmatpush1.msra.mxu0 0.0
      %258 = vmatprep.subr.mxu0 0.0
      %259 = vmatpush1.msra.mxu0 0.0
      %260 = vmatprep.subr.mxu0 0.0
      %261 = vmatpush1.msra.mxu0 0.0
      %262 = vmatprep.subr.mxu0 0.0
      %263 = vmatpush1.msra.mxu0 0.0
      %264 = vmatprep.subr.mxu0 0.0
      %265 = vmatpush1.msra.mxu0 0.0
      %266 = vmatprep.subr.mxu0 0.0
      %267 = vmatpush1.msra.mxu0 0.0
      %268 = vmatprep.subr.mxu0 0.0
      %269 = vmatpush1.msra.mxu0 0.0
      %270 = vmatprep.subr.mxu0 0.0
      %271 = vmatpush1.msra.mxu0 0.0
      %272 = vmatprep.subr.mxu0 0.0
      %273 = vmatpush1.msra.mxu0 0.0
      %274 = vmatprep.subr.mxu0 0.0
      %275 = vmatpush1.msra.mxu0 0.0
      %276 = vmatprep.subr.mxu0 0.0
      %277 = vmatpush1.msra.mxu0 0.0
      %278 = vmatprep.subr.mxu0 0.0
      %279 = vmatpush1.msra.mxu0 0.0
      %280 = vmatprep.subr.mxu0 0.0
      %281 = vmatpush1.msra.mxu0 0.0
      %282 = vmatprep.subr.mxu0 0.0
      %283 = vmatpush1.msra.mxu0 0.0
      %284 = vmatprep.subr.mxu0 0.0
      %285 = vmatpush1.msra.mxu0 0.0
      %286 = vmatprep.subr.mxu0 0.0
      %287 = vmatpush1.msra.mxu0 0.0
      %288 = vmatprep.subr.mxu0 0.0
      %289 = vmatpush1.msra.mxu0 0.0
      %290 = vmatprep.subr.mxu0 0.0
      %291 = vmatpush1.msra.mxu0 0.0
      %292 = vmatprep.subr.mxu0 0.0
      %293 = vmatpush1.msra.mxu0 0.0
      %294 = vmatprep.subr.mxu0 0.0
      %295 = vmatpush1.msra.mxu0 0.0
      %296 = vmatprep.subr.mxu0 0.0
      %297 = vmatpush1.msra.mxu0 0.0
      %298 = vmatprep.subr.mxu0 0.0
      %299 = vmatpush1.msra.mxu0 0.0
      %300 = vmatprep.subr.mxu0 0.0
      %301 = vmatpush1.msra.mxu0 0.0
      %302 = vmatprep.subr.mxu0 0.0
      %303 = vmatpush1.msra.mxu0 0.0
      %304 = vmatprep.subr.mxu0 0.0
      %305 = vmatpush1.msra.mxu0 0.0
      %306 = vmatprep.subr.mxu0 0.0
      %307 = vmatpush1.msra.mxu0 0.0
      %308 = vmatprep.mubr.f32.mxu0 0.0
      %309 = vmatmul.mubr.f32.gmra.mrb[0].mxu0 %v242
      %v310 = vpop.f32.mrb[0].mxu0
      %v311 = vadd.f32 %v239, %v310
      %v312 = vpop.f32.mrb[0].mxu0
      %313 = vdwg.mxu0
      %314 = vst [vmem:[#allocation8] sm:$0xff] %v311
    $region45: #{tpu_custom_call.1} parent=1 // pred_fallthru
      _
    // Predicated region
    $region46: #{tpu_custom_call.1} parent=1 // pred_check
      _
    $region47: #{tpu_custom_call.1} parent=1 // pred_check_branch
      %316 = sbr.rel (0) target = $region49
    $region48: #{tpu_custom_call.1} parent=1 // pred_region
      %s318 = ssub.s32 128, 128
      %319 = vsyncadd [#allocation5], %s318
      %s321 = sshll.u32 [#allocation8], 4
      %s322 = int_to_ptr.vmem [resolvable:$true] %s321
      %324 = dma.vmem_to_hbm [thread:$0]  %s322, 128, %s7, [#allocation5]
    $region49: #{tpu_custom_call.1} parent=1 // pred_fallthru
      _
    // Predicated region
    $region50: #{tpu_custom_call.1} parent=1 // pred_check
      _
    $region51: #{tpu_custom_call.1} parent=1 // pred_check_branch
      %326 = sbr.rel (0) target = $region53
    $region52: #{tpu_custom_call.1} parent=1 // pred_region
      %327 = dma.done [#allocation5], 128
    $region53: #{tpu_custom_call.1} parent=1 // pred_fallthru
      _
    %328 = vsyncpa [#allocation4], 1
    %329 = vsyncpa [#allocation7], 1
    %330 = vsyncpa [#allocation5], 1

</llo_original>
